<compile_context>
chip_gen: v7x
topology: tpu7x:2x2x1
jax: 0.10.0
libtpu: 0.0.40
codegen_flags: <defaults>
</compile_context>

<pallas_src>
import functools

import jax
import jax.numpy as jnp
from jax import lax
from jax.experimental import pallas as pl
from jax.experimental.pallas import tpu as pltpu


def snn_loss_kernel(x_ref, y_col_ref, y_row_ref, out_ref, *, tpow):
    x = x_ref[...].astype(jnp.float32)            # (B, D)
    y_col = y_col_ref[...]                        # (B, 1) int32
    y_row = y_row_ref[...]                        # (1, B) int32
    b, d = x.shape
    n = b * d

    # Per-row sum of squares; reused for the gram expansion AND the variance.
    sq = jnp.sum(x * x, axis=1, keepdims=True)                    # (B, 1)

    # torch.var() default: flattened, unbiased.  One-pass form reusing sq:
    #   var = (sum(x^2) - n*mean^2) / (n - 1)
    mean = jnp.sum(x) / n
    var = (jnp.sum(sq) - n * mean * mean) / (n - 1)

    # Pairwise squared euclidean distances via gram matrix on the MXU.
    # dot_general contracts axis 1 of x against axis 1 of x (x @ x.T) without
    # materializing a transposed copy.
    gram = lax.dot_general(
        x, x,
        dimension_numbers=(((1,), (1,)), ((), ())),
        preferred_element_type=jnp.float32,
    )                                                             # (B, B)
    pair = sq + sq.T - 2.0 * gram                                 # (B, B)

    # e_dist = -pair / (2*var) * 10**temp   (tpow baked in at trace time)
    scale = tpow / (2.0 * var)
    e_dist = -pair * scale                                        # (B, B)

    row = lax.broadcasted_iota(jnp.int32, (b, b), 0)
    col = lax.broadcasted_iota(jnp.int32, (b, b), 1)
    diag = row == col
    same = y_col == y_row                                         # (B, B)

    neg_inf = jnp.float32(-jnp.inf)

    # Shared logsumexp: one row max (over the off-diagonal entries, i.e. the
    # denominator support) and a single exp pass feed both reductions.
    m = jnp.max(jnp.where(diag, neg_inf, e_dist), axis=1, keepdims=True)
    m_safe = jnp.where(jnp.isfinite(m), m, 0.0)                   # (B, 1)
    p = jnp.where(diag, 0.0, jnp.exp(e_dist - m_safe))            # (B, B)

    den_sum = jnp.sum(p, axis=1, keepdims=True)                   # (B, 1)
    num_sum = jnp.sum(jnp.where(same, p, 0.0), axis=1, keepdims=True)

    num = m_safe + jnp.log(num_sum)   # -inf when a row has no same-class peer
    den = m_safe + jnp.log(den_sum)

    # torch: den[isinf(num)] = 0; num[isinf(num)] = 0  ==>  diff = 0 there
    diff = jnp.where(jnp.isinf(num), 0.0, num - den)              # (B, 1)

    # loss = -(num - den).mean()  -> scalar written straight to SMEM
    out_ref[0] = -jnp.sum(diff) * (1.0 / b)


def snn_loss(x, y, temp=0.0):
    """x: (B, D) float features, y: (B,) int labels, temp: log10 temperature."""
    b, d = x.shape
    x = x.astype(jnp.float32)
    y = y.astype(jnp.int32)
    y_col = y.reshape(b, 1)
    y_row = y.reshape(1, b)
    tpow = float(10.0 ** float(temp))

    out = pl.pallas_call(
        functools.partial(snn_loss_kernel, tpow=tpow),
        out_shape=jax.ShapeDtypeStruct((1,), jnp.float32),
        in_specs=[
            pl.BlockSpec(memory_space=pltpu.MemorySpace.VMEM),
            pl.BlockSpec(memory_space=pltpu.MemorySpace.VMEM),
            pl.BlockSpec(memory_space=pltpu.MemorySpace.VMEM),
        ],
        out_specs=pl.BlockSpec(memory_space=pltpu.MemorySpace.SMEM),
    )(x, y_col, y_row)
    return out[0]


def _snn_loss_ref(x, y, temp=0.0):
    """Pure-JAX mirror of the PyTorch reference (for a sanity check)."""
    x = x.astype(jnp.float32)
    b = x.shape[0]
    var = jnp.var(x, ddof=1)
    diffs = x[:, None, :] - x[None, :, :]
    dist = jnp.sum(diffs * diffs, axis=2) / (2.0 * var)
    e_dist = -dist * (10.0 ** float(temp))
    eye = jnp.eye(b, dtype=bool)
    den_dist = jnp.where(eye, -jnp.inf, e_dist)
    same = y[:, None] == y[None, :]
    num_dist = jnp.where(same & ~eye, e_dist, -jnp.inf)
    num = jax.nn.logsumexp(num_dist, axis=1)
    den = jax.nn.logsumexp(den_dist, axis=1)
    diff = jnp.where(jnp.isinf(num), 0.0, num - den)
    return -jnp.mean(diff)


if __name__ == "__main__":
    key = jax.random.PRNGKey(0)
    kx, ky = jax.random.split(key)

    B, D = 8, 32
    x = jax.random.normal(kx, (B, D), dtype=jnp.float32)
    y = jax.random.randint(ky, (B,), 0, 3, dtype=jnp.int32)

    loss = snn_loss(x, y, temp=0.0)
    jax.block_until_ready(loss)

    ref = _snn_loss_ref(x, y, temp=0.0)
    assert jnp.allclose(loss, ref, rtol=1e-3, atol=1e-3), (loss, ref)

    print("KERNEL_OK")
</pallas_src>

<mosaic_0001>
module attributes {stable_mosaic.version = 11 : i64} {
  func.func @snn_loss_kernel(%arg0: memref<8x32xf32, #tpu.memory_space<vmem>>, %arg1: memref<8x1xi32, #tpu.memory_space<vmem>>, %arg2: memref<1x8xi32, #tpu.memory_space<vmem>>, %arg3: memref<1xf32, #tpu.memory_space<smem>>) attributes {dimension_semantics = [], scalar_prefetch = 0 : i64, scratch_operands = 0 : i64, tpu.core_type = #tpu.core_type<tc>} {
    %c0 = arith.constant 0 : index
    %c0_0 = arith.constant 0 : index
    %0 = vector.load %arg0[%c0, %c0_0] : memref<8x32xf32, #tpu.memory_space<vmem>>, vector<8x32xf32>
    %c0_1 = arith.constant 0 : index
    %c0_2 = arith.constant 0 : index
    %1 = vector.load %arg1[%c0_1, %c0_2] : memref<8x1xi32, #tpu.memory_space<vmem>>, vector<8x1xi32>
    %c0_3 = arith.constant 0 : index
    %c0_4 = arith.constant 0 : index
    %2 = vector.load %arg2[%c0_3, %c0_4] : memref<1x8xi32, #tpu.memory_space<vmem>>, vector<1x8xi32>
    %3 = arith.mulf %0, %0 : vector<8x32xf32>
    %cst = arith.constant dense<0.000000e+00> : vector<8xf32>
    %4 = vector.multi_reduction <add>, %3, %cst [1] : vector<8x32xf32> to vector<8xf32>
    %5 = vector.shape_cast %4 : vector<8xf32> to vector<8x1xf32>
    %6 = vector.shape_cast %0 : vector<8x32xf32> to vector<1x8x32xf32>
    %cst_5 = arith.constant dense<0.000000e+00> : vector<1xf32>
    %7 = vector.multi_reduction <add>, %6, %cst_5 [1, 2] : vector<1x8x32xf32> to vector<1xf32>
    %8 = vector.shape_cast %7 : vector<1xf32> to vector<1x1x1xf32>
    %9 = vector.extract %8[0, 0, 0] : f32 from vector<1x1x1xf32>
    %cst_6 = arith.constant 2.560000e+02 : f32
    %10 = arith.divf %9, %cst_6 : f32
    %11 = vector.shape_cast %5 : vector<8x1xf32> to vector<1x8x1xf32>
    %cst_7 = arith.constant dense<0.000000e+00> : vector<1xf32>
    %12 = vector.multi_reduction <add>, %11, %cst_7 [1, 2] : vector<1x8x1xf32> to vector<1xf32>
    %13 = vector.shape_cast %12 : vector<1xf32> to vector<1x1x1xf32>
    %14 = vector.extract %13[0, 0, 0] : f32 from vector<1x1x1xf32>
    %cst_8 = arith.constant 2.560000e+02 : f32
    %15 = arith.mulf %cst_8, %10 : f32
    %16 = arith.mulf %15, %10 : f32
    %17 = arith.subf %14, %16 : f32
    %cst_9 = arith.constant 2.550000e+02 : f32
    %18 = arith.divf %17, %cst_9 : f32
    %cst_10 = arith.constant dense<0.000000e+00> : vector<8x8xf32>
    %19 = tpu.matmul %0, %0, %cst_10 {dimension_numbers = #tpu.dot_dimension_numbers<[1], [1], [0], [0], [0, 0, 1, 0], [], []>} : vector<8x32xf32>, vector<8x32xf32>, vector<8x8xf32> -> vector<8x8xf32>
    %20 = tpu.transpose %5, [1, 0] : vector<8x1xf32> -> vector<1x8xf32>
    %21 = vector.broadcast %5 : vector<8x1xf32> to vector<8x8xf32>
    %22 = vector.broadcast %20 : vector<1x8xf32> to vector<8x8xf32>
    %23 = arith.addf %21, %22 : vector<8x8xf32>
    %cst_11 = arith.constant 2.000000e+00 : f32
    %24 = vector.broadcast %cst_11 : f32 to vector<8x8xf32>
    %25 = arith.mulf %24, %19 : vector<8x8xf32>
    %26 = arith.subf %23, %25 : vector<8x8xf32>
    %cst_12 = arith.constant 2.000000e+00 : f32
    %27 = arith.mulf %cst_12, %18 : f32
    %cst_13 = arith.constant 1.000000e+00 : f32
    %28 = arith.divf %cst_13, %27 : f32
    %cst_14 = arith.constant 0.000000e+00 : f32
    %29 = vector.broadcast %cst_14 : f32 to vector<8x8xf32>
    %30 = arith.subf %29, %26 : vector<8x8xf32>
    %31 = vector.broadcast %28 : f32 to vector<8x8xf32>
    %32 = arith.mulf %30, %31 : vector<8x8xf32>
    %33 = tpu.iota {dimensions = array<i32: 0>} : vector<8x8xi32>
    %34 = tpu.iota {dimensions = array<i32: 1>} : vector<8x8xi32>
    %35 = arith.cmpi eq, %33, %34 : vector<8x8xi32>
    %36 = vector.broadcast %1 : vector<8x1xi32> to vector<8x8xi32>
    %37 = vector.broadcast %2 : vector<1x8xi32> to vector<8x8xi32>
    %38 = arith.cmpi eq, %36, %37 : vector<8x8xi32>
    %cst_15 = arith.constant 0xFF800000 : f32
    %39 = vector.broadcast %cst_15 : f32 to vector<8x8xf32>
    %40 = arith.select %35, %39, %32 : vector<8x8xi1>, vector<8x8xf32>
    %cst_16 = arith.constant dense<0xFF800000> : vector<8xf32>
    %41 = vector.multi_reduction <maximumf>, %40, %cst_16 [1] : vector<8x8xf32> to vector<8xf32>
    %42 = vector.shape_cast %41 : vector<8xf32> to vector<8x1xf32>
    %43 = tpu.weird %42 : vector<8x1xf32> -> vector<8x1xi1>
    %cst_17 = arith.constant dense<true> : vector<8x1xi1>
    %44 = arith.xori %43, %cst_17 : vector<8x1xi1>
    %cst_18 = arith.constant 0.000000e+00 : f32
    %45 = vector.broadcast %cst_18 : f32 to vector<8x1xf32>
    %46 = arith.select %44, %42, %45 : vector<8x1xi1>, vector<8x1xf32>
    %47 = vector.broadcast %46 : vector<8x1xf32> to vector<8x8xf32>
    %48 = arith.subf %32, %47 : vector<8x8xf32>
    %49 = math.exp %48 : vector<8x8xf32>
    %cst_19 = arith.constant 0.000000e+00 : f32
    %50 = vector.broadcast %cst_19 : f32 to vector<8x8xf32>
    %51 = arith.select %35, %50, %49 : vector<8x8xi1>, vector<8x8xf32>
    %cst_20 = arith.constant dense<0.000000e+00> : vector<8xf32>
    %52 = vector.multi_reduction <add>, %51, %cst_20 [1] : vector<8x8xf32> to vector<8xf32>
    %53 = vector.shape_cast %52 : vector<8xf32> to vector<8x1xf32>
    %cst_21 = arith.constant 0.000000e+00 : f32
    %54 = vector.broadcast %cst_21 : f32 to vector<8x8xf32>
    %55 = arith.select %38, %51, %54 : vector<8x8xi1>, vector<8x8xf32>
    %cst_22 = arith.constant dense<0.000000e+00> : vector<8xf32>
    %56 = vector.multi_reduction <add>, %55, %cst_22 [1] : vector<8x8xf32> to vector<8xf32>
    %57 = vector.shape_cast %56 : vector<8xf32> to vector<8x1xf32>
    %58 = math.log %57 : vector<8x1xf32>
    %59 = arith.addf %46, %58 : vector<8x1xf32>
    %60 = math.log %53 : vector<8x1xf32>
    %61 = arith.addf %46, %60 : vector<8x1xf32>
    %62 = math.absf %59 : vector<8x1xf32>
    %cst_23 = arith.constant 0x7F800000 : f32
    %63 = vector.broadcast %cst_23 : f32 to vector<8x1xf32>
    %64 = arith.cmpf oeq, %62, %63 : vector<8x1xf32>
    %65 = arith.subf %59, %61 : vector<8x1xf32>
    %cst_24 = arith.constant 0.000000e+00 : f32
    %66 = vector.broadcast %cst_24 : f32 to vector<8x1xf32>
    %67 = arith.select %64, %66, %65 : vector<8x1xi1>, vector<8x1xf32>
    %68 = vector.shape_cast %67 : vector<8x1xf32> to vector<1x8x1xf32>
    %cst_25 = arith.constant dense<0.000000e+00> : vector<1xf32>
    %69 = vector.multi_reduction <add>, %68, %cst_25 [1, 2] : vector<1x8x1xf32> to vector<1xf32>
    %70 = vector.shape_cast %69 : vector<1xf32> to vector<1x1x1xf32>
    %71 = vector.extract %70[0, 0, 0] : f32 from vector<1x1x1xf32>
    %cst_26 = arith.constant 0.000000e+00 : f32
    %72 = arith.subf %cst_26, %71 : f32
    %cst_27 = arith.constant 1.250000e-01 : f32
    %73 = arith.mulf %72, %cst_27 : f32
    %c0_28 = arith.constant 0 : index
    %74 = memref.load %arg3[%c0_28] : memref<1xf32, #tpu.memory_space<smem>>
    memref.store %73, %arg3[%c0_28] : memref<1xf32, #tpu.memory_space<smem>>
    return
  }
}

</mosaic_0001>

<llo_original>
// kernel: tpu_custom_call.1
$region0: #{tpu_custom_call.1}
  #allocation0 [shape = 'u32[]', space=smem, size = 0x4, offset = 0x4, fixed_abs, tag = 'smem constant byte address 0x4 - core index']
  #allocation1 [shape = 'u32[144,128]{1,0:T(1,128)}', space=vmem, size = 0x12000, scoped, tag = 'internal scratch']
  %s0 = inlined_call_operand.vmem [shape: f32[8,32], index: 0, kind: input, shape index: {}]
  %s1 = inlined_call_operand.vmem [shape: s32[8,1], index: 1, kind: input, shape index: {}]
  %s2 = inlined_call_operand.vmem [shape: s32[1,8], index: 2, kind: input, shape index: {}]
  %s3 = inlined_call_operand.hbm [shape: f32[1], index: 3, kind: output, shape index: {}]
  %s4 = sld [smem:[#allocation0]]
  $region22: #{tpu_custom_call.1} parent=0
    _
  %s6 = ssub.s32 1, %s4
  %s7 = scalar_select 0, %s6, %s4
  $region1: #{tpu_custom_call.1} parent=0
    #allocation2 [shape = 'u8[512]{0}', space=smem, size = 0x200, scoped, tag = 'output window, operand 0, single buffered']
    #allocation3 [shape = 's32[1]{0}', space=sflag, size = 0x4, scoped, tag = 'scoped memory for tpu_custom_call.1']
    %8 = vsyncpa [#allocation3], 0
    // Predicated region
    $region2: #{tpu_custom_call.1} parent=1 // pred_check
      _
    $region3: #{tpu_custom_call.1} parent=1 // pred_check_branch
      %10 = sbr.rel (0) target = $region5
    $region4: #{tpu_custom_call.1} parent=1 // pred_region
      _
    $region5: #{tpu_custom_call.1} parent=1 // pred_fallthru
      _
    // Predicated region
    $region6: #{tpu_custom_call.1} parent=1 // pred_check
      _
    $region7: #{tpu_custom_call.1} parent=1 // pred_check_branch
      %12 = sbr.rel (0) target = $region9
    $region8: #{tpu_custom_call.1} parent=1 // pred_region
      _
    $region9: #{tpu_custom_call.1} parent=1 // pred_fallthru
      _
    // Predicated region
    $region10: #{tpu_custom_call.1} parent=1 // pred_check
      _
    $region11: #{tpu_custom_call.1} parent=1 // pred_check_branch
      %14 = sbr.rel (0) target = $region13
    $region12: #{tpu_custom_call.1} parent=1 // pred_region
      _
    $region13: #{tpu_custom_call.1} parent=1 // pred_fallthru
      _
    %v15 = vld [vmem:[%s0] sm:$0xff]
    %v16 = vld [vmem:[%s1] sm:$0xff]
    %v17 = vld [vmem:[%s2] sm:$0x1]
    %v18 = vmul.f32 %v15, %v15
    %vm19 = vcmask 261120
    %v20 = vsel %vm19, %v18, 0.0
    %21 = vadd.xlane.f32.xlu0 %v20
    %v22 = vpop.xlane.xlu0 %21
    %v23 = vsel %vm19, %v15, 0.0
    %24 = vadd.xlane.f32.xlu0 %v23
    %v25 = vpop.xlane.xlu0 %24
    %v26 = vrot.slane %v25, 4
    %v27 = vadd.f32 %v25, %v26
    %v28 = vrot.slane %v27, 2
    %v29 = vadd.f32 %v27, %v28
    %v30 = vrot.slane %v29, 1
    %v31 = vadd.f32 %v29, %v30
    %s32 = vtos %v31
    %v33 = vrcp.pop 256.0
    %s34 = vtos %v33
    %s35 = smul.f32 %s32, %s34
    %vm36 = vcmask 7168
    %v37 = vsel %vm36, %v22, 0.0
    %38 = vadd.xlane.f32.xlu0 %v37
    %v39 = vpop.xlane.xlu0 %38
    %v40 = vrot.slane %v39, 4
    %v41 = vadd.f32 %v39, %v40
    %v42 = vrot.slane %v41, 2
    %v43 = vadd.f32 %v41, %v42
    %v44 = vrot.slane %v43, 1
    %v45 = vadd.f32 %v43, %v44
    %s46 = vtos %v45
    %s47 = smul.f32 %s35, 256.0
    %s48 = smul.f32 %s47, %s35
    %s49 = ssub.f32 %s46, %s48
    %v50 = vrcp.pop 255.0
    %s51 = vtos %v50
    %s52 = smul.f32 %s49, %s51
    %v54 = vsel %vm19, %v15, 0
    %56 = vmatprep.subr.mxu0 0.0
    %57 = vmatpush1.xpose.msra.mxu0 %v54
    %58 = vmatprep.subr.mxu0 0.0
    %59 = vmatpush1.xpose.msra.mxu0 0.0
    %60 = vmatprep.subr.mxu0 0.0
    %61 = vmatpush1.xpose.msra.mxu0 0.0
    %62 = vmatprep.subr.mxu0 0.0
    %63 = vmatpush1.xpose.msra.mxu0 0.0
    %64 = vmatprep.subr.mxu0 0.0
    %65 = vmatpush1.xpose.msra.mxu0 0.0
    %66 = vmatprep.subr.mxu0 0.0
    %67 = vmatpush1.xpose.msra.mxu0 0.0
    %68 = vmatprep.subr.mxu0 0.0
    %69 = vmatpush1.xpose.msra.mxu0 0.0
    %70 = vmatprep.subr.mxu0 0.0
    %71 = vmatpush1.xpose.msra.mxu0 0.0
    %72 = vmatprep.subr.mxu0 0.0
    %73 = vmatpush1.xpose.msra.mxu0 0.0
    %74 = vmatprep.subr.mxu0 0.0
    %75 = vmatpush1.xpose.msra.mxu0 0.0
    %76 = vmatprep.subr.mxu0 0.0
    %77 = vmatpush1.xpose.msra.mxu0 0.0
    %78 = vmatprep.subr.mxu0 0.0
    %79 = vmatpush1.xpose.msra.mxu0 0.0
    %80 = vmatprep.subr.mxu0 0.0
    %81 = vmatpush1.xpose.msra.mxu0 0.0
    %82 = vmatprep.subr.mxu0 0.0
    %83 = vmatpush1.xpose.msra.mxu0 0.0
    %84 = vmatprep.subr.mxu0 0.0
    %85 = vmatpush1.xpose.msra.mxu0 0.0
    %86 = vmatprep.subr.mxu0 0.0
    %87 = vmatpush1.xpose.msra.mxu0 0.0
    %88 = vmatprep.subr.mxu0 0.0
    %89 = vmatpush1.xpose.msra.mxu0 0.0
    %90 = vmatprep.subr.mxu0 0.0
    %91 = vmatpush1.xpose.msra.mxu0 0.0
    %92 = vmatprep.subr.mxu0 0.0
    %93 = vmatpush1.xpose.msra.mxu0 0.0
    %94 = vmatprep.subr.mxu0 0.0
    %95 = vmatpush1.xpose.msra.mxu0 0.0
    %96 = vmatprep.subr.mxu0 0.0
    %97 = vmatpush1.xpose.msra.mxu0 0.0
    %98 = vmatprep.subr.mxu0 0.0
    %99 = vmatpush1.xpose.msra.mxu0 0.0
    %100 = vmatprep.subr.mxu0 0.0
    %101 = vmatpush1.xpose.msra.mxu0 0.0
    %102 = vmatprep.subr.mxu0 0.0
    %103 = vmatpush1.xpose.msra.mxu0 0.0
    %104 = vmatprep.subr.mxu0 0.0
    %105 = vmatpush1.xpose.msra.mxu0 0.0
    %106 = vmatprep.subr.mxu0 0.0
    %107 = vmatpush1.xpose.msra.mxu0 0.0
    %108 = vmatprep.subr.mxu0 0.0
    %109 = vmatpush1.xpose.msra.mxu0 0.0
    %110 = vmatprep.subr.mxu0 0.0
    %111 = vmatpush1.xpose.msra.mxu0 0.0
    %112 = vmatprep.subr.mxu0 0.0
    %113 = vmatpush1.xpose.msra.mxu0 0.0
    %114 = vmatprep.subr.mxu0 0.0
    %115 = vmatpush1.xpose.msra.mxu0 0.0
    %116 = vmatprep.subr.mxu0 0.0
    %117 = vmatpush1.xpose.msra.mxu0 0.0
    %118 = vmatprep.subr.mxu0 0.0
    %119 = vmatpush1.xpose.msra.mxu0 0.0
    %120 = vmatprep.mubr.f32.mxu0 0.0
    %121 = vmatmul.mubr.f32.gmra.mrb[0].mxu0 %v54
    %v122 = vpop.f32.mrb[0].mxu0
    %v123 = vadd.f32 0.0, %v122
    %v124 = vpop.f32.mrb[0].mxu0
    %125 = vdwg.mxu0
    %126 = vxpose.xlu0.b32.start [1/16] %v22, 128
    %127 = vxpose.xlu0.b32.cont [2/16] 0.0, 128
    %128 = vxpose.xlu0.b32.cont [3/16] 0.0, 128
    %129 = vxpose.xlu0.b32.cont [4/16] 0.0, 128
    %130 = vxpose.xlu0.b32.cont [5/16] 0.0, 128
    %131 = vxpose.xlu0.b32.cont [6/16] 0.0, 128
    %132 = vxpose.xlu0.b32.cont [7/16] 0.0, 128
    %133 = vxpose.xlu0.b32.cont [8/16] 0.0, 128
    %134 = vxpose.xlu0.b32.cont [9/16] 0.0, 128
    %135 = vxpose.xlu0.b32.cont [10/16] 0.0, 128
    %136 = vxpose.xlu0.b32.cont [11/16] 0.0, 128
    %137 = vxpose.xlu0.b32.cont [12/16] 0.0, 128
    %138 = vxpose.xlu0.b32.cont [13/16] 0.0, 128
    %139 = vxpose.xlu0.b32.cont [14/16] 0.0, 128
    %140 = vxpose.xlu0.b32.cont [15/16] 0.0, 128
    %141 = vxpose.xlu0.b32.end [16/16] 0.0, 128
    %v142 = vpop.trf.xlu0
    %v143 = vpop.trf.xlu0
    %v144 = vpop.trf.xlu0
    %v145 = vpop.trf.xlu0
    %v146 = vpop.trf.xlu0
    %v147 = vpop.trf.xlu0
    %v148 = vpop.trf.xlu0
    %v149 = vpop.trf.xlu0
    %v150 = vpop.trf.xlu0
    %v151 = vpop.trf.xlu0
    %v152 = vpop.trf.xlu0
    %v153 = vpop.trf.xlu0
    %v154 = vpop.trf.xlu0
    %v155 = vpop.trf.xlu0
    %v156 = vpop.trf.xlu0
    %v157 = vpop.trf.xlu0
    %v158 = vlaneseq
    %v159 = vshrl.u32 %v158, 7
    %v160 = vsub.s32 0, %v159
    %v161 = vrot.slane %v142, %v160
    %v162 = vadd.f32 %v22, %v161
    %v163 = vmul.f32 %v123, 2.0
    %v164 = vsub.f32 %v162, %v163
    %s165 = smul.f32 %s52, 2.0
    %v166 = vstv %s165
    %v167 = vrcp.pop %v166
    %s168 = vtos %v167
    %v169 = vsub.f32 0.0, %v164
    %v170 = vstv %s168
    %v171 = vmul.f32 %v169, %v170
    %v172 = vlaneseq
    %v173 = vshrl.u32 %v172, 7
    %v174 = vlaneseq
    %v175 = vand.u32 %v174, 127
    %vm176 = vcmp.eq.s32.totalorder %v173, %v175
    %177 = vset.pattern.permute.xlu0 0
    %178 = vperm.xlu0 %177, %v16
    %v179 = vpop.permute.xlu0 %178
    %v180 = vlaneseq
    %v181 = vshrl.u32 %v180, 7
    %v182 = vsub.s32 0, %v181
    %v183 = vrot.slane %v17, %v182
    %vm184 = vcmp.eq.s32.totalorder %v179, %v183
    %v185 = vsel %vm176, -inf, %v171
    %vm186 = vcmask 64512
    %v187 = vsel %vm186, %v185, -inf
    %188 = vmax.xlane.f32.xlu0 %v187
    %v189 = vpop.xlane.xlu0 %188
    %vm190 = vweird.f32 %v189
    %vm191 = vmxor %vm190, 1
    %v192 = vsel %vm191, %v189, 0.0
    %v193 = vsub.f32 %v171, %v192
    %v194 = vmul.f32 %v193, 1.442695
    %v195 = vpow.pop %v194
    %v196 = vsel %vm176, 0.0, %v195
    %v197 = vsel %vm186, %v196, 0.0
    %198 = vadd.xlane.f32.xlu0 %v197
    %v199 = vpop.xlane.xlu0 %198
    %v200 = vsel %vm184, %v196, 0.0
    %v201 = vsel %vm186, %v200, 0.0
    %202 = vadd.xlane.f32.xlu0 %v201
    %v203 = vpop.xlane.xlu0 %202
    %v204 = vlog2.pop %v203
    %v205 = vmul.f32 %v204, 0.6931472
    %v206 = vadd.f32 %v192, %v205
    %v207 = vlog2.pop %v199
    %v208 = vmul.f32 %v207, 0.6931472
    %v209 = vadd.f32 %v192, %v208
    %v210 = vand.u32 2147483647, %v206
    %vm211 = vcmp.eq.f32.partialorder %v210, inf
    %v212 = vsub.f32 %v206, %v209
    %v213 = vsel %vm211, 0.0, %v212
    %v214 = vsel %vm36, %v213, 0.0
    %215 = vadd.xlane.f32.xlu0 %v214
    %v216 = vpop.xlane.xlu0 %215
    %v217 = vrot.slane %v216, 4
    %v218 = vadd.f32 %v216, %v217
    %v219 = vrot.slane %v218, 2
    %v220 = vadd.f32 %v218, %v219
    %v221 = vrot.slane %v220, 1
    %v222 = vadd.f32 %v220, %v221
    %s223 = vtos %v222
    %s224 = ssub.f32 0.0, %s223
    %s225 = smul.f32 %s224, 0.125
    %s226 = scalar_lea.smem [#allocation2], 0
    %227 = sst [smem:[%s226]] %s225
    // Predicated region
    $region14: #{tpu_custom_call.1} parent=1 // pred_check
      _
    $region15: #{tpu_custom_call.1} parent=1 // pred_check_branch
      %229 = sbr.rel (0) target = $region17
    $region16: #{tpu_custom_call.1} parent=1 // pred_region
      %s231 = ssub.s32 16, 16
      %232 = vsyncadd [#allocation3], %s231
      %235 = dma.smem_to_hbm [#allocation2], 16, %s3, [#allocation3]
    $region17: #{tpu_custom_call.1} parent=1 // pred_fallthru
      _
    // Predicated region
    $region18: #{tpu_custom_call.1} parent=1 // pred_check
      _
    $region19: #{tpu_custom_call.1} parent=1 // pred_check_branch
      %237 = sbr.rel (0) target = $region21
    $region20: #{tpu_custom_call.1} parent=1 // pred_region
      %238 = dma.done [#allocation3], 16
    $region21: #{tpu_custom_call.1} parent=1 // pred_fallthru
      _
    %239 = sfence
    %240 = vsyncpa [#allocation3], 1

</llo_original>
